<compile_context>
chip_gen: v5e
topology: v5e:2x2
jax: 0.10.0
libtpu: 0.0.40
codegen_flags: <defaults>
</compile_context>

<pallas_src>
import numpy as np
import jax
import jax.numpy as jnp
from jax.experimental import pallas as pl
from jax.experimental.pallas import tpu as pltpu

EPS = 1e-5


# ----------------------------------------------------------------------------
# Fused kernel: (conv3x3 + BN(train) + ReLU) x 2, fully VMEM/lane-dense
# ----------------------------------------------------------------------------
def duocon_kernel(x_ref, t1_ref, p1_ref, g1_ref, be1_ref,
                  t2_ref, p2_ref, g2_ref, be2_ref,
                  o_ref, xpad1_ref, xpad2_ref):
    """
    x_ref:       (N, Cin, H, W)          NCHW input block (read directly; no
                                         wrapper transpose)
    t*_ref:      (3, Cin_s*W, Cout_s*W)  per-kh banded Toeplitz-in-W weights
    p*_ref:      (C*W, C*W)              channel-pool matrix (1/(N*H*W) folded in)
    g*/be*_ref:  (1, C*W)                BN gamma/beta pre-expanded to the lane
                                         pattern lane = c*W + w
    o_ref:       (N*H, Cout*W)           lane-dense output, lanes = (c_out, w)
    xpad*_ref:   (N, H+2, C*W)           per-stage halo scratch (rows 0 and H+1
                                         are the zero halo; rows 1..H hold data)
    """
    N, Cin, H, W = x_ref.shape
    NH = N * H

    def conv_bn_relu(xpad_ref, t_ref, p_ref, g_ref, be_ref):
        cw_in = xpad_ref.shape[-1]

        # 3x3 conv == three dense MXU matmuls (one per kh tap row); the W-tap
        # band and W zero padding live inside t_ref, the H zero padding in the
        # scratch halo rows.  No im2col scratch, no memset, no masked tap stores.
        def tap(kh):
            lhs = xpad_ref[:, kh:kh + H, :].reshape(NH, cw_in)
            return jnp.dot(lhs, t_ref[kh], preferred_element_type=jnp.float32)

        acc = tap(0) + tap(1) + tap(2)                 # (NH, C*W), lane-dense

        # Training-mode BatchNorm: batch mean + biased batch variance, two-pass
        # (acc/cen are only 4 vregs in this layout -> no spills).  The channel
        # pool matmul turns per-lane column sums into per-channel means
        # replicated back onto the lane pattern in one MXU op.
        mean = jnp.dot(jnp.sum(acc, axis=0, keepdims=True), p_ref[...],
                       preferred_element_type=jnp.float32)
        cen = acc - mean
        var = jnp.dot(jnp.sum(cen * cen, axis=0, keepdims=True), p_ref[...],
                      preferred_element_type=jnp.float32)
        scale = g_ref[...] * jax.lax.rsqrt(var + EPS)
        return jnp.maximum(cen * scale + be_ref[...], 0.0)   # ReLU, lane-dense

    # ---- Stage 1 ------------------------------------------------------------
    # In-kernel NCHW -> lane-dense relayout (replaces the wrapper transpose and
    # any padded-HBM round trip): Cin small lane-offset stores + 2 halo rows.
    cw1 = xpad1_ref.shape[-1]                          # Cin*W
    xpad1_ref[:, 0, :] = jnp.zeros((N, cw1), jnp.float32)
    xpad1_ref[:, H + 1, :] = jnp.zeros((N, cw1), jnp.float32)
    for ci in range(Cin):
        xpad1_ref[:, 1:H + 1, ci * W:(ci + 1) * W] = x_ref[:, ci, :, :]
    a1 = conv_bn_relu(xpad1_ref, t1_ref, p1_ref, g1_ref, be1_ref)

    # ---- Stage 2 (consumes the VMEM-resident stage-1 activation) ------------
    cw2 = xpad2_ref.shape[-1]                          # Cmid*W
    xpad2_ref[:, 0, :] = jnp.zeros((N, cw2), jnp.float32)
    xpad2_ref[:, H + 1, :] = jnp.zeros((N, cw2), jnp.float32)
    xpad2_ref[:, 1:H + 1, :] = a1.reshape(N, H, cw2)
    a2 = conv_bn_relu(xpad2_ref, t2_ref, p2_ref, g2_ref, be2_ref)

    # Single unmasked full-width lane-dense store (32 x 128 here).
    o_ref[...] = a2


# ----------------------------------------------------------------------------
# Host-side parameter prep (tiny, cacheable per-parameter)
# ----------------------------------------------------------------------------
def _toeplitz_weights(w_oihw, width):
    """OIHW 3x3 weights -> (3, Cin*W, Cout*W) banded Toeplitz-in-W matrices.

    T[kh, ci*W + w_in, co*W + w_out] = w[co, ci, kh, kw]  with  w_in = w_out + kw - 1,
    so `lhs(rows=(n,h), lanes=(ci,w)) @ T[kh]` is exactly the kh tap row of the
    'same'-padded conv (out-of-range w taps fall outside the band -> zero).
    """
    eyes = [jnp.eye(width, k=1 - kw, dtype=jnp.float32) for kw in range(3)]
    per_kh = []
    for kh in range(3):
        t = sum(jnp.kron(w_oihw[:, :, kh, kw].T, eyes[kw]) for kw in range(3))
        per_kh.append(t)
    return jnp.stack(per_kh)                            # (3, Cin*W, Cout*W)


def _channel_pool(channels, width, count):
    """(C*W, C*W) block matrix: lane l pools 1/count from every lane of its
    channel group, i.e. colsum @ P == per-channel batch mean replicated onto
    the lane pattern."""
    blk = jnp.full((width, width), 1.0 / count, jnp.float32)
    return jnp.kron(jnp.eye(channels, dtype=jnp.float32), blk)


def _lane_expand(v, width):
    """(C,) -> (1, C*W) with lane = c*W + w (so no in-kernel broadcast needed)."""
    return jnp.repeat(v, width)[None, :]


# ----------------------------------------------------------------------------
# Wrapper: NCHW in -> NCHW out (like the PyTorch module)
# ----------------------------------------------------------------------------
def duocon_forward(x_nchw, params):
    N, Cin, H, W = x_nchw.shape
    Cmid = params["w1"].shape[0]
    Cout = params["w2"].shape[0]
    count = N * H * W                                   # BN normalizes over N,H,W

    t1 = _toeplitz_weights(params["w1"], W)             # (3, Cin*W,  Cmid*W)
    t2 = _toeplitz_weights(params["w2"], W)             # (3, Cmid*W, Cout*W)
    p1 = _channel_pool(Cmid, W, count)                  # (Cmid*W, Cmid*W)
    p2 = _channel_pool(Cout, W, count)                  # (Cout*W, Cout*W)
    g1, be1 = _lane_expand(params["g1"], W), _lane_expand(params["be1"], W)
    g2, be2 = _lane_expand(params["g2"], W), _lane_expand(params["be2"], W)
    # Conv biases b1/b2 are intentionally NOT passed: a per-channel bias added
    # before training-mode BatchNorm cancels exactly in (y - mean).

    out2d = pl.pallas_call(
        duocon_kernel,
        out_shape=jax.ShapeDtypeStruct((N * H, Cout * W), jnp.float32),
        grid=(1,),
        in_specs=[
            pl.BlockSpec((N, Cin, H, W), lambda i: (0, 0, 0, 0)),
            pl.BlockSpec((3, Cin * W, Cmid * W), lambda i: (0, 0, 0)),
            pl.BlockSpec((Cmid * W, Cmid * W), lambda i: (0, 0)),
            pl.BlockSpec((1, Cmid * W), lambda i: (0, 0)),
            pl.BlockSpec((1, Cmid * W), lambda i: (0, 0)),
            pl.BlockSpec((3, Cmid * W, Cout * W), lambda i: (0, 0, 0)),
            pl.BlockSpec((Cout * W, Cout * W), lambda i: (0, 0)),
            pl.BlockSpec((1, Cout * W), lambda i: (0, 0)),
            pl.BlockSpec((1, Cout * W), lambda i: (0, 0)),
        ],
        out_specs=pl.BlockSpec((N * H, Cout * W), lambda i: (0, 0)),
        scratch_shapes=[
            pltpu.VMEM((N, H + 2, Cin * W), jnp.float32),    # stage-1 halo slab
            pltpu.VMEM((N, H + 2, Cmid * W), jnp.float32),   # stage-2 halo slab
        ],
        # Single-step grid; for real sizes add a leading 'parallel' N/H-tile
        # axis (2-row halo) + two-phase BN to use both v7x TensorCores.
        compiler_params=pltpu.CompilerParams(
            dimension_semantics=("arbitrary",)),
    )(x_nchw, t1, p1, g1, be1, t2, p2, g2, be2)

    # (N*H, Cout*W) lanes=(c_out,w) -> NCHW: metadata reshape + one small
    # (H,Cout) transpose (the only remaining wrapper-level layout op; writing
    # NCHW directly from the kernel would force lane-sparse masked stores).
    return jnp.transpose(out2d.reshape(N, H, Cout, W), (0, 2, 1, 3))
    # TODO(synk): BatchNorm running_mean/running_var buffer updates are a
    # training-only side effect and do not affect the forward output; omitted.


# ----------------------------------------------------------------------------
# Deterministic parameter init (shapes from DuoCon.__init__)
# ----------------------------------------------------------------------------
def init_params(key, cin, cmid, cout):
    ks = jax.random.split(key, 4)
    return dict(
        w1=0.1 * jax.random.normal(ks[0], (cmid, cin, 3, 3), jnp.float32),  # OIHW
        b1=0.05 * jax.random.normal(ks[1], (cmid,), jnp.float32),
        g1=jnp.ones((cmid,), jnp.float32),     # BatchNorm gamma default init
        be1=jnp.zeros((cmid,), jnp.float32),   # BatchNorm beta default init
        w2=0.1 * jax.random.normal(ks[2], (cout, cmid, 3, 3), jnp.float32),
        b2=0.05 * jax.random.normal(ks[3], (cout,), jnp.float32),
        g2=jnp.ones((cout,), jnp.float32),
        be2=jnp.zeros((cout,), jnp.float32),
    )


# ----------------------------------------------------------------------------
# Pure-JAX reference (matches PyTorch train-mode forward, biases included)
# ----------------------------------------------------------------------------
def ref_duocon(x_nchw, p):
    def stage(x, w, b, g, be):
        y = jax.lax.conv_general_dilated(
            x, w, window_strides=(1, 1), padding=((1, 1), (1, 1)),
            dimension_numbers=("NCHW", "OIHW", "NCHW")) + b[None, :, None, None]
        mean = y.mean(axis=(0, 2, 3))
        var = y.var(axis=(0, 2, 3))  # biased, as torch uses for normalization
        yn = (y - mean[None, :, None, None]) * \
            jax.lax.rsqrt(var + EPS)[None, :, None, None]
        return jnp.maximum(yn * g[None, :, None, None] +
                           be[None, :, None, None], 0.0)

    h = stage(x_nchw, p["w1"], p["b1"], p["g1"], p["be1"])
    return stage(h, p["w2"], p["b2"], p["g2"], p["be2"])


if __name__ == "__main__":
    key = jax.random.PRNGKey(0)
    kx, kp = jax.random.split(key)

    N, Cin, H, W = 2, 4, 16, 16
    Cmid = Cout = 8  # DuoCon default: mid_channels = out_channels

    x = jax.random.normal(kx, (N, Cin, H, W), jnp.float32)  # NCHW like PyTorch
    params = init_params(kp, Cin, Cmid, Cout)

    out = jax.block_until_ready(duocon_forward(x, params))
    ref = jax.block_until_ready(ref_duocon(x, params))

    assert out.shape == (N, Cout, H, W)
    np.testing.assert_allclose(np.asarray(out), np.asarray(ref),
                               atol=2e-3, rtol=2e-3)
    print("KERNEL_OK")
</pallas_src>

<mosaic_0001>
module attributes {stable_mosaic.version = 11 : i64} {
  func.func @duocon_kernel(%arg0: i32, %arg1: memref<2x4x16x16xf32, #tpu.memory_space<vmem>>, %arg2: memref<3x64x128xf32, #tpu.memory_space<vmem>>, %arg3: memref<128x128xf32, #tpu.memory_space<vmem>>, %arg4: memref<1x128xf32, #tpu.memory_space<vmem>>, %arg5: memref<1x128xf32, #tpu.memory_space<vmem>>, %arg6: memref<3x128x128xf32, #tpu.memory_space<vmem>>, %arg7: memref<128x128xf32, #tpu.memory_space<vmem>>, %arg8: memref<1x128xf32, #tpu.memory_space<vmem>>, %arg9: memref<1x128xf32, #tpu.memory_space<vmem>>, %arg10: memref<32x128xf32, #tpu.memory_space<vmem>>, %arg11: memref<2x18x64xf32, #tpu.memory_space<vmem>>, %arg12: memref<2x18x128xf32, #tpu.memory_space<vmem>>) attributes {dimension_semantics = [#tpu.dimension_semantics<arbitrary>], iteration_bounds = array<i64: 1>, scalar_prefetch = 0 : i64, scratch_operands = 2 : i64, tpu.core_type = #tpu.core_type<tc>, window_params = [{pipeline_mode = #tpu.pipeline_mode<synchronous>, transform_indices = @transform_0, window_bounds = array<i64: 2, 4, 16, 16>}, {pipeline_mode = #tpu.pipeline_mode<synchronous>, transform_indices = @transform_1, window_bounds = array<i64: 3, 64, 128>}, {pipeline_mode = #tpu.pipeline_mode<synchronous>, transform_indices = @transform_2, window_bounds = array<i64: 128, 128>}, {pipeline_mode = #tpu.pipeline_mode<synchronous>, transform_indices = @transform_3, window_bounds = array<i64: 1, 128>}, {pipeline_mode = #tpu.pipeline_mode<synchronous>, transform_indices = @transform_4, window_bounds = array<i64: 1, 128>}, {pipeline_mode = #tpu.pipeline_mode<synchronous>, transform_indices = @transform_5, window_bounds = array<i64: 3, 128, 128>}, {pipeline_mode = #tpu.pipeline_mode<synchronous>, transform_indices = @transform_6, window_bounds = array<i64: 128, 128>}, {pipeline_mode = #tpu.pipeline_mode<synchronous>, transform_indices = @transform_7, window_bounds = array<i64: 1, 128>}, {pipeline_mode = #tpu.pipeline_mode<synchronous>, transform_indices = @transform_8, window_bounds = array<i64: 1, 128>}, {pipeline_mode = #tpu.pipeline_mode<synchronous>, transform_indices = @transform_9, window_bounds = array<i64: 32, 128>}]} {
    %cst = arith.constant 0.000000e+00 : f32
    %0 = vector.broadcast %cst : f32 to vector<2x64xf32>
    %c0 = arith.constant 0 : index
    %c0_0 = arith.constant 0 : index
    %c0_1 = arith.constant 0 : index
    %1 = vector.load %arg11[%c0, %c0_0, %c0_1] : memref<2x18x64xf32, #tpu.memory_space<vmem>>, vector<2x1x64xf32>
    %2 = vector.shape_cast %1 : vector<2x1x64xf32> to vector<2x64xf32>
    %3 = vector.shape_cast %0 : vector<2x64xf32> to vector<2x1x64xf32>
    tpu.vector_store %arg11[%c0, %c0_0, %c0_1], %3 {strides = array<i32>} : memref<2x18x64xf32, #tpu.memory_space<vmem>>, vector<2x1x64xf32>,
    %cst_2 = arith.constant 0.000000e+00 : f32
    %4 = vector.broadcast %cst_2 : f32 to vector<2x64xf32>
    %c0_3 = arith.constant 0 : index
    %c17 = arith.constant 17 : index
    %c0_4 = arith.constant 0 : index
    %5 = vector.load %arg11[%c0_3, %c17, %c0_4] : memref<2x18x64xf32, #tpu.memory_space<vmem>>, vector<2x1x64xf32>
    %6 = vector.shape_cast %5 : vector<2x1x64xf32> to vector<2x64xf32>
    %7 = vector.shape_cast %4 : vector<2x64xf32> to vector<2x1x64xf32>
    tpu.vector_store %arg11[%c0_3, %c17, %c0_4], %7 {strides = array<i32>} : memref<2x18x64xf32, #tpu.memory_space<vmem>>, vector<2x1x64xf32>,
    %c0_5 = arith.constant 0 : index
    %c0_6 = arith.constant 0 : index
    %c0_7 = arith.constant 0 : index
    %c0_8 = arith.constant 0 : index
    %8 = vector.load %arg1[%c0_5, %c0_6, %c0_7, %c0_8] : memref<2x4x16x16xf32, #tpu.memory_space<vmem>>, vector<2x1x16x16xf32>
    %9 = vector.shape_cast %8 : vector<2x1x16x16xf32> to vector<2x16x16xf32>
    %c0_9 = arith.constant 0 : index
    %c1 = arith.constant 1 : index
    %c0_10 = arith.constant 0 : index
    %10 = vector.load %arg11[%c0_9, %c1, %c0_10] : memref<2x18x64xf32, #tpu.memory_space<vmem>>, vector<2x16x16xf32>
    tpu.vector_store %arg11[%c0_9, %c1, %c0_10], %9 {strides = array<i32>} : memref<2x18x64xf32, #tpu.memory_space<vmem>>, vector<2x16x16xf32>,
    %c0_11 = arith.constant 0 : index
    %c1_12 = arith.constant 1 : index
    %c0_13 = arith.constant 0 : index
    %c0_14 = arith.constant 0 : index
    %11 = vector.load %arg1[%c0_11, %c1_12, %c0_13, %c0_14] : memref<2x4x16x16xf32, #tpu.memory_space<vmem>>, vector<2x1x16x16xf32>
    %12 = vector.shape_cast %11 : vector<2x1x16x16xf32> to vector<2x16x16xf32>
    %c0_15 = arith.constant 0 : index
    %c1_16 = arith.constant 1 : index
    %c16 = arith.constant 16 : index
    %13 = vector.load %arg11[%c0_15, %c1_16, %c16] : memref<2x18x64xf32, #tpu.memory_space<vmem>>, vector<2x16x16xf32>
    tpu.vector_store %arg11[%c0_15, %c1_16, %c16], %12 {strides = array<i32>} : memref<2x18x64xf32, #tpu.memory_space<vmem>>, vector<2x16x16xf32>,
    %c0_17 = arith.constant 0 : index
    %c2 = arith.constant 2 : index
    %c0_18 = arith.constant 0 : index
    %c0_19 = arith.constant 0 : index
    %14 = vector.load %arg1[%c0_17, %c2, %c0_18, %c0_19] : memref<2x4x16x16xf32, #tpu.memory_space<vmem>>, vector<2x1x16x16xf32>
    %15 = vector.shape_cast %14 : vector<2x1x16x16xf32> to vector<2x16x16xf32>
    %c0_20 = arith.constant 0 : index
    %c1_21 = arith.constant 1 : index
    %c32 = arith.constant 32 : index
    %16 = vector.load %arg11[%c0_20, %c1_21, %c32] : memref<2x18x64xf32, #tpu.memory_space<vmem>>, vector<2x16x16xf32>
    tpu.vector_store %arg11[%c0_20, %c1_21, %c32], %15 {strides = array<i32>} : memref<2x18x64xf32, #tpu.memory_space<vmem>>, vector<2x16x16xf32>,
    %c0_22 = arith.constant 0 : index
    %c3 = arith.constant 3 : index
    %c0_23 = arith.constant 0 : index
    %c0_24 = arith.constant 0 : index
    %17 = vector.load %arg1[%c0_22, %c3, %c0_23, %c0_24] : memref<2x4x16x16xf32, #tpu.memory_space<vmem>>, vector<2x1x16x16xf32>
    %18 = vector.shape_cast %17 : vector<2x1x16x16xf32> to vector<2x16x16xf32>
    %c0_25 = arith.constant 0 : index
    %c1_26 = arith.constant 1 : index
    %c48 = arith.constant 48 : index
    %19 = vector.load %arg11[%c0_25, %c1_26, %c48] : memref<2x18x64xf32, #tpu.memory_space<vmem>>, vector<2x16x16xf32>
    tpu.vector_store %arg11[%c0_25, %c1_26, %c48], %18 {strides = array<i32>} : memref<2x18x64xf32, #tpu.memory_space<vmem>>, vector<2x16x16xf32>,
    %c0_27 = arith.constant 0 : index
    %c0_28 = arith.constant 0 : index
    %c0_29 = arith.constant 0 : index
    %20 = vector.load %arg11[%c0_27, %c0_28, %c0_29] : memref<2x18x64xf32, #tpu.memory_space<vmem>>, vector<2x16x64xf32>
    %21 = vector.shape_cast %20 : vector<2x16x64xf32> to vector<32x64xf32>
    %c0_30 = arith.constant 0 : index
    %c0_31 = arith.constant 0 : index
    %c0_32 = arith.constant 0 : index
    %22 = vector.load %arg2[%c0_30, %c0_31, %c0_32] : memref<3x64x128xf32, #tpu.memory_space<vmem>>, vector<1x64x128xf32>
    %23 = vector.shape_cast %22 : vector<1x64x128xf32> to vector<64x128xf32>
    %cst_33 = arith.constant dense<0.000000e+00> : vector<32x128xf32>
    %24 = tpu.matmul %21, %23, %cst_33 {dimension_numbers = #tpu.dot_dimension_numbers<[1], [0], [0], [1], [0, 0, 1, 1], [], []>} : vector<32x64xf32>, vector<64x128xf32>, vector<32x128xf32> -> vector<32x128xf32>
    %c0_34 = arith.constant 0 : index
    %c1_35 = arith.constant 1 : index
    %c0_36 = arith.constant 0 : index
    %25 = vector.load %arg11[%c0_34, %c1_35, %c0_36] : memref<2x18x64xf32, #tpu.memory_space<vmem>>, vector<2x16x64xf32>
    %26 = vector.shape_cast %25 : vector<2x16x64xf32> to vector<32x64xf32>
    %c1_37 = arith.constant 1 : index
    %c0_38 = arith.constant 0 : index
    %c0_39 = arith.constant 0 : index
    %27 = vector.load %arg2[%c1_37, %c0_38, %c0_39] : memref<3x64x128xf32, #tpu.memory_space<vmem>>, vector<1x64x128xf32>
    %28 = vector.shape_cast %27 : vector<1x64x128xf32> to vector<64x128xf32>
    %cst_40 = arith.constant dense<0.000000e+00> : vector<32x128xf32>
    %29 = tpu.matmul %26, %28, %cst_40 {dimension_numbers = #tpu.dot_dimension_numbers<[1], [0], [0], [1], [0, 0, 1, 1], [], []>} : vector<32x64xf32>, vector<64x128xf32>, vector<32x128xf32> -> vector<32x128xf32>
    %30 = arith.addf %24, %29 : vector<32x128xf32>
    %c0_41 = arith.constant 0 : index
    %c2_42 = arith.constant 2 : index
    %c0_43 = arith.constant 0 : index
    %31 = vector.load %arg11[%c0_41, %c2_42, %c0_43] : memref<2x18x64xf32, #tpu.memory_space<vmem>>, vector<2x16x64xf32>
    %32 = vector.shape_cast %31 : vector<2x16x64xf32> to vector<32x64xf32>
    %c2_44 = arith.constant 2 : index
    %c0_45 = arith.constant 0 : index
    %c0_46 = arith.constant 0 : index
    %33 = vector.load %arg2[%c2_44, %c0_45, %c0_46] : memref<3x64x128xf32, #tpu.memory_space<vmem>>, vector<1x64x128xf32>
    %34 = vector.shape_cast %33 : vector<1x64x128xf32> to vector<64x128xf32>
    %cst_47 = arith.constant dense<0.000000e+00> : vector<32x128xf32>
    %35 = tpu.matmul %32, %34, %cst_47 {dimension_numbers = #tpu.dot_dimension_numbers<[1], [0], [0], [1], [0, 0, 1, 1], [], []>} : vector<32x64xf32>, vector<64x128xf32>, vector<32x128xf32> -> vector<32x128xf32>
    %36 = arith.addf %30, %35 : vector<32x128xf32>
    %cst_48 = arith.constant dense<0.000000e+00> : vector<128xf32>
    %37 = vector.multi_reduction <add>, %36, %cst_48 [0] : vector<32x128xf32> to vector<128xf32>
    %38 = vector.shape_cast %37 : vector<128xf32> to vector<1x128xf32>
    %c0_49 = arith.constant 0 : index
    %c0_50 = arith.constant 0 : index
    %39 = vector.load %arg3[%c0_49, %c0_50] : memref<128x128xf32, #tpu.memory_space<vmem>>, vector<128x128xf32>
    %cst_51 = arith.constant dense<0.000000e+00> : vector<1x128xf32>
    %40 = tpu.matmul %38, %39, %cst_51 {dimension_numbers = #tpu.dot_dimension_numbers<[1], [0], [0], [1], [0, 0, 1, 1], [], []>} : vector<1x128xf32>, vector<128x128xf32>, vector<1x128xf32> -> vector<1x128xf32>
    %41 = vector.broadcast %40 : vector<1x128xf32> to vector<32x128xf32>
    %42 = arith.subf %36, %41 : vector<32x128xf32>
    %43 = arith.mulf %42, %42 : vector<32x128xf32>
    %cst_52 = arith.constant dense<0.000000e+00> : vector<128xf32>
    %44 = vector.multi_reduction <add>, %43, %cst_52 [0] : vector<32x128xf32> to vector<128xf32>
    %45 = vector.shape_cast %44 : vector<128xf32> to vector<1x128xf32>
    %c0_53 = arith.constant 0 : index
    %c0_54 = arith.constant 0 : index
    %46 = vector.load %arg3[%c0_53, %c0_54] : memref<128x128xf32, #tpu.memory_space<vmem>>, vector<128x128xf32>
    %cst_55 = arith.constant dense<0.000000e+00> : vector<1x128xf32>
    %47 = tpu.matmul %45, %46, %cst_55 {dimension_numbers = #tpu.dot_dimension_numbers<[1], [0], [0], [1], [0, 0, 1, 1], [], []>} : vector<1x128xf32>, vector<128x128xf32>, vector<1x128xf32> -> vector<1x128xf32>
    %c0_56 = arith.constant 0 : index
    %c0_57 = arith.constant 0 : index
    %48 = vector.load %arg4[%c0_56, %c0_57] : memref<1x128xf32, #tpu.memory_space<vmem>>, vector<1x128xf32>
    %cst_58 = arith.constant 9.99999974E-6 : f32
    %49 = vector.broadcast %cst_58 : f32 to vector<1x128xf32>
    %50 = arith.addf %47, %49 : vector<1x128xf32>
    %51 = math.rsqrt %50 : vector<1x128xf32>
    %52 = arith.mulf %48, %51 : vector<1x128xf32>
    %53 = vector.broadcast %52 : vector<1x128xf32> to vector<32x128xf32>
    %54 = arith.mulf %42, %53 : vector<32x128xf32>
    %c0_59 = arith.constant 0 : index
    %c0_60 = arith.constant 0 : index
    %55 = vector.load %arg5[%c0_59, %c0_60] : memref<1x128xf32, #tpu.memory_space<vmem>>, vector<1x128xf32>
    %56 = vector.broadcast %55 : vector<1x128xf32> to vector<32x128xf32>
    %57 = arith.addf %54, %56 : vector<32x128xf32>
    %cst_61 = arith.constant 0.000000e+00 : f32
    %58 = vector.broadcast %cst_61 : f32 to vector<32x128xf32>
    %59 = arith.maximumf %57, %58 : vector<32x128xf32>
    %cst_62 = arith.constant 0.000000e+00 : f32
    %60 = vector.broadcast %cst_62 : f32 to vector<2x128xf32>
    %c0_63 = arith.constant 0 : index
    %c0_64 = arith.constant 0 : index
    %c0_65 = arith.constant 0 : index
    %61 = vector.load %arg12[%c0_63, %c0_64, %c0_65] : memref<2x18x128xf32, #tpu.memory_space<vmem>>, vector<2x1x128xf32>
    %62 = vector.shape_cast %61 : vector<2x1x128xf32> to vector<2x128xf32>
    %63 = vector.shape_cast %60 : vector<2x128xf32> to vector<2x1x128xf32>
    tpu.vector_store %arg12[%c0_63, %c0_64, %c0_65], %63 {strides = array<i32>} : memref<2x18x128xf32, #tpu.memory_space<vmem>>, vector<2x1x128xf32>,
    %cst_66 = arith.constant 0.000000e+00 : f32
    %64 = vector.broadcast %cst_66 : f32 to vector<2x128xf32>
    %c0_67 = arith.constant 0 : index
    %c17_68 = arith.constant 17 : index
    %c0_69 = arith.constant 0 : index
    %65 = vector.load %arg12[%c0_67, %c17_68, %c0_69] : memref<2x18x128xf32, #tpu.memory_space<vmem>>, vector<2x1x128xf32>
    %66 = vector.shape_cast %65 : vector<2x1x128xf32> to vector<2x128xf32>
    %67 = vector.shape_cast %64 : vector<2x128xf32> to vector<2x1x128xf32>
    tpu.vector_store %arg12[%c0_67, %c17_68, %c0_69], %67 {strides = array<i32>} : memref<2x18x128xf32, #tpu.memory_space<vmem>>, vector<2x1x128xf32>,
    %68 = vector.shape_cast %59 : vector<32x128xf32> to vector<2x16x128xf32>
    %c0_70 = arith.constant 0 : index
    %c1_71 = arith.constant 1 : index
    %c0_72 = arith.constant 0 : index
    %69 = vector.load %arg12[%c0_70, %c1_71, %c0_72] : memref<2x18x128xf32, #tpu.memory_space<vmem>>, vector<2x16x128xf32>
    tpu.vector_store %arg12[%c0_70, %c1_71, %c0_72], %68 {strides = array<i32>} : memref<2x18x128xf32, #tpu.memory_space<vmem>>, vector<2x16x128xf32>,
    %c0_73 = arith.constant 0 : index
    %c0_74 = arith.constant 0 : index
    %c0_75 = arith.constant 0 : index
    %70 = vector.load %arg12[%c0_73, %c0_74, %c0_75] : memref<2x18x128xf32, #tpu.memory_space<vmem>>, vector<2x16x128xf32>
    %71 = vector.shape_cast %70 : vector<2x16x128xf32> to vector<32x128xf32>
    %c0_76 = arith.constant 0 : index
    %c0_77 = arith.constant 0 : index
    %c0_78 = arith.constant 0 : index
    %72 = vector.load %arg6[%c0_76, %c0_77, %c0_78] : memref<3x128x128xf32, #tpu.memory_space<vmem>>, vector<1x128x128xf32>
    %73 = vector.shape_cast %72 : vector<1x128x128xf32> to vector<128x128xf32>
    %cst_79 = arith.constant dense<0.000000e+00> : vector<32x128xf32>
    %74 = tpu.matmul %71, %73, %cst_79 {dimension_numbers = #tpu.dot_dimension_numbers<[1], [0], [0], [1], [0, 0, 1, 1], [], []>} : vector<32x128xf32>, vector<128x128xf32>, vector<32x128xf32> -> vector<32x128xf32>
    %c0_80 = arith.constant 0 : index
    %c1_81 = arith.constant 1 : index
    %c0_82 = arith.constant 0 : index
    %75 = vector.load %arg12[%c0_80, %c1_81, %c0_82] : memref<2x18x128xf32, #tpu.memory_space<vmem>>, vector<2x16x128xf32>
    %76 = vector.shape_cast %75 : vector<2x16x128xf32> to vector<32x128xf32>
    %c1_83 = arith.constant 1 : index
    %c0_84 = arith.constant 0 : index
    %c0_85 = arith.constant 0 : index
    %77 = vector.load %arg6[%c1_83, %c0_84, %c0_85] : memref<3x128x128xf32, #tpu.memory_space<vmem>>, vector<1x128x128xf32>
    %78 = vector.shape_cast %77 : vector<1x128x128xf32> to vector<128x128xf32>
    %cst_86 = arith.constant dense<0.000000e+00> : vector<32x128xf32>
    %79 = tpu.matmul %76, %78, %cst_86 {dimension_numbers = #tpu.dot_dimension_numbers<[1], [0], [0], [1], [0, 0, 1, 1], [], []>} : vector<32x128xf32>, vector<128x128xf32>, vector<32x128xf32> -> vector<32x128xf32>
    %80 = arith.addf %74, %79 : vector<32x128xf32>
    %c0_87 = arith.constant 0 : index
    %c2_88 = arith.constant 2 : index
    %c0_89 = arith.constant 0 : index
    %81 = vector.load %arg12[%c0_87, %c2_88, %c0_89] : memref<2x18x128xf32, #tpu.memory_space<vmem>>, vector<2x16x128xf32>
    %82 = vector.shape_cast %81 : vector<2x16x128xf32> to vector<32x128xf32>
    %c2_90 = arith.constant 2 : index
    %c0_91 = arith.constant 0 : index
    %c0_92 = arith.constant 0 : index
    %83 = vector.load %arg6[%c2_90, %c0_91, %c0_92] : memref<3x128x128xf32, #tpu.memory_space<vmem>>, vector<1x128x128xf32>
    %84 = vector.shape_cast %83 : vector<1x128x128xf32> to vector<128x128xf32>
    %cst_93 = arith.constant dense<0.000000e+00> : vector<32x128xf32>
    %85 = tpu.matmul %82, %84, %cst_93 {dimension_numbers = #tpu.dot_dimension_numbers<[1], [0], [0], [1], [0, 0, 1, 1], [], []>} : vector<32x128xf32>, vector<128x128xf32>, vector<32x128xf32> -> vector<32x128xf32>
    %86 = arith.addf %80, %85 : vector<32x128xf32>
    %cst_94 = arith.constant dense<0.000000e+00> : vector<128xf32>
    %87 = vector.multi_reduction <add>, %86, %cst_94 [0] : vector<32x128xf32> to vector<128xf32>
    %88 = vector.shape_cast %87 : vector<128xf32> to vector<1x128xf32>
    %c0_95 = arith.constant 0 : index
    %c0_96 = arith.constant 0 : index
    %89 = vector.load %arg7[%c0_95, %c0_96] : memref<128x128xf32, #tpu.memory_space<vmem>>, vector<128x128xf32>
    %cst_97 = arith.constant dense<0.000000e+00> : vector<1x128xf32>
    %90 = tpu.matmul %88, %89, %cst_97 {dimension_numbers = #tpu.dot_dimension_numbers<[1], [0], [0], [1], [0, 0, 1, 1], [], []>} : vector<1x128xf32>, vector<128x128xf32>, vector<1x128xf32> -> vector<1x128xf32>
    %91 = vector.broadcast %90 : vector<1x128xf32> to vector<32x128xf32>
    %92 = arith.subf %86, %91 : vector<32x128xf32>
    %93 = arith.mulf %92, %92 : vector<32x128xf32>
    %cst_98 = arith.constant dense<0.000000e+00> : vector<128xf32>
    %94 = vector.multi_reduction <add>, %93, %cst_98 [0] : vector<32x128xf32> to vector<128xf32>
    %95 = vector.shape_cast %94 : vector<128xf32> to vector<1x128xf32>
    %c0_99 = arith.constant 0 : index
    %c0_100 = arith.constant 0 : index
    %96 = vector.load %arg7[%c0_99, %c0_100] : memref<128x128xf32, #tpu.memory_space<vmem>>, vector<128x128xf32>
    %cst_101 = arith.constant dense<0.000000e+00> : vector<1x128xf32>
    %97 = tpu.matmul %95, %96, %cst_101 {dimension_numbers = #tpu.dot_dimension_numbers<[1], [0], [0], [1], [0, 0, 1, 1], [], []>} : vector<1x128xf32>, vector<128x128xf32>, vector<1x128xf32> -> vector<1x128xf32>
    %c0_102 = arith.constant 0 : index
    %c0_103 = arith.constant 0 : index
    %98 = vector.load %arg8[%c0_102, %c0_103] : memref<1x128xf32, #tpu.memory_space<vmem>>, vector<1x128xf32>
    %cst_104 = arith.constant 9.99999974E-6 : f32
    %99 = vector.broadcast %cst_104 : f32 to vector<1x128xf32>
    %100 = arith.addf %97, %99 : vector<1x128xf32>
    %101 = math.rsqrt %100 : vector<1x128xf32>
    %102 = arith.mulf %98, %101 : vector<1x128xf32>
    %103 = vector.broadcast %102 : vector<1x128xf32> to vector<32x128xf32>
    %104 = arith.mulf %92, %103 : vector<32x128xf32>
    %c0_105 = arith.constant 0 : index
    %c0_106 = arith.constant 0 : index
    %105 = vector.load %arg9[%c0_105, %c0_106] : memref<1x128xf32, #tpu.memory_space<vmem>>, vector<1x128xf32>
    %106 = vector.broadcast %105 : vector<1x128xf32> to vector<32x128xf32>
    %107 = arith.addf %104, %106 : vector<32x128xf32>
    %cst_107 = arith.constant 0.000000e+00 : f32
    %108 = vector.broadcast %cst_107 : f32 to vector<32x128xf32>
    %109 = arith.maximumf %107, %108 : vector<32x128xf32>
    %c0_108 = arith.constant 0 : index
    %c0_109 = arith.constant 0 : index
    %110 = vector.load %arg10[%c0_108, %c0_109] : memref<32x128xf32, #tpu.memory_space<vmem>>, vector<32x128xf32>
    tpu.vector_store %arg10[%c0_108, %c0_109], %109 {strides = array<i32>} : memref<32x128xf32, #tpu.memory_space<vmem>>, vector<32x128xf32>,
    return
  }
  func.func @transform_0(%arg0: i32) -> (i32, i32, i32, i32) {
    %c0_i32 = arith.constant 0 : i32
    %c0_i32_0 = arith.constant 0 : i32
    %c0_i32_1 = arith.constant 0 : i32
    %c0_i32_2 = arith.constant 0 : i32
    %c0_i32_3 = arith.constant 0 : i32
    return %c0_i32, %c0_i32_0, %c0_i32_1, %c0_i32_2 : i32, i32, i32, i32
  }
  func.func @transform_1(%arg0: i32) -> (i32, i32, i32) {
    %c0_i32 = arith.constant 0 : i32
    %c0_i32_0 = arith.constant 0 : i32
    %c0_i32_1 = arith.constant 0 : i32
    %c0_i32_2 = arith.constant 0 : i32
    return %c0_i32, %c0_i32_0, %c0_i32_1 : i32, i32, i32
  }
  func.func @transform_2(%arg0: i32) -> (i32, i32) {
    %c0_i32 = arith.constant 0 : i32
    %c0_i32_0 = arith.constant 0 : i32
    %c0_i32_1 = arith.constant 0 : i32
    return %c0_i32, %c0_i32_0 : i32, i32
  }
  func.func @transform_3(%arg0: i32) -> (i32, i32) {
    %c0_i32 = arith.constant 0 : i32
    %c0_i32_0 = arith.constant 0 : i32
    %c0_i32_1 = arith.constant 0 : i32
    return %c0_i32, %c0_i32_0 : i32, i32
  }
  func.func @transform_4(%arg0: i32) -> (i32, i32) {
    %c0_i32 = arith.constant 0 : i32
    %c0_i32_0 = arith.constant 0 : i32
    %c0_i32_1 = arith.constant 0 : i32
    return %c0_i32, %c0_i32_0 : i32, i32
  }
  func.func @transform_5(%arg0: i32) -> (i32, i32, i32) {
    %c0_i32 = arith.constant 0 : i32
    %c0_i32_0 = arith.constant 0 : i32
    %c0_i32_1 = arith.constant 0 : i32
    %c0_i32_2 = arith.constant 0 : i32
    return %c0_i32, %c0_i32_0, %c0_i32_1 : i32, i32, i32
  }
  func.func @transform_6(%arg0: i32) -> (i32, i32) {
    %c0_i32 = arith.constant 0 : i32
    %c0_i32_0 = arith.constant 0 : i32
    %c0_i32_1 = arith.constant 0 : i32
    return %c0_i32, %c0_i32_0 : i32, i32
  }
  func.func @transform_7(%arg0: i32) -> (i32, i32) {
    %c0_i32 = arith.constant 0 : i32
    %c0_i32_0 = arith.constant 0 : i32
    %c0_i32_1 = arith.constant 0 : i32
    return %c0_i32, %c0_i32_0 : i32, i32
  }
  func.func @transform_8(%arg0: i32) -> (i32, i32) {
    %c0_i32 = arith.constant 0 : i32
    %c0_i32_0 = arith.constant 0 : i32
    %c0_i32_1 = arith.constant 0 : i32
    return %c0_i32, %c0_i32_0 : i32, i32
  }
  func.func @transform_9(%arg0: i32) -> (i32, i32) {
    %c0_i32 = arith.constant 0 : i32
    %c0_i32_0 = arith.constant 0 : i32
    %c0_i32_1 = arith.constant 0 : i32
    return %c0_i32, %c0_i32_0 : i32, i32
  }
}

</mosaic_0001>

<llo_original>
// kernel: tpu_custom_call.1
$region0: #{tpu_custom_call.1}
  #allocation0 [shape = 'u32[]', space=smem, size = 0x4, offset = 0x4, fixed_abs, tag = 'smem constant byte address 0x4 - core index']
  #allocation1 [shape = 'u32[72,128]{1,0:T(1,128)}', space=vmem, size = 0x9000, scoped, tag = 'internal scratch']
  #allocation2 [shape = 'f32[2,18,64]{2,1,0:T(8,128)}', space=vmem, size = 0x6000, scoped, tag = 'scratch operand']
  #allocation3 [shape = 'f32[2,18,128]{2,1,0:T(8,128)}', space=vmem, size = 0x6000, scoped, tag = 'scratch operand']
  %s0 = inlined_call_operand.hbm [shape: f32[2,4,16,16], index: 0, kind: input, shape index: {}]
  %s1 = inlined_call_operand.hbm [shape: f32[3,64,128], index: 1, kind: input, shape index: {}]
  %s2 = inlined_call_operand.hbm [shape: f32[128,128], index: 2, kind: input, shape index: {}]
  %s3 = inlined_call_operand.vmem [shape: f32[1,128], index: 3, kind: input, shape index: {}]
  %s4 = inlined_call_operand.vmem [shape: f32[1,128], index: 4, kind: input, shape index: {}]
  %s5 = inlined_call_operand.hbm [shape: f32[3,128,128], index: 5, kind: input, shape index: {}]
  %s6 = inlined_call_operand.hbm [shape: f32[128,128], index: 6, kind: input, shape index: {}]
  %s7 = inlined_call_operand.vmem [shape: f32[1,128], index: 7, kind: input, shape index: {}]
  %s8 = inlined_call_operand.vmem [shape: f32[1,128], index: 8, kind: input, shape index: {}]
  %s9 = inlined_call_operand.hbm [shape: f32[32,128], index: 9, kind: output, shape index: {}]
  %s10 = sld [smem:[#allocation0]]
  $region66: #{tpu_custom_call.1} parent=0
    _
  %s12 = ssub.s32 1, %s10
  %s13 = scalar_select 0, %s12, %s10
  $region1: #{tpu_custom_call.1} parent=0
    #allocation4 [shape = 'u8[65536]{0}', space=vmem, size = 0x10000, scoped, tag = 'input window, operand 0, single buffered']
    #allocation5 [shape = 's32[1]{0}', space=sflag, size = 0x4, scoped, tag = 'scoped memory for tpu_custom_call.1']
    #allocation6 [shape = 's32[1]{0}', space=sflag, size = 0x4, scoped, tag = 'scoped memory for tpu_custom_call.1']
    #allocation7 [shape = 'u8[98304]{0}', space=vmem, size = 0x18000, scoped, tag = 'input window, operand 1, single buffered']
    #allocation8 [shape = 's32[1]{0}', space=sflag, size = 0x4, scoped, tag = 'scoped memory for tpu_custom_call.1']
    #allocation9 [shape = 'u8[65536]{0}', space=vmem, size = 0x10000, scoped, tag = 'input window, operand 2, single buffered']
    #allocation10 [shape = 'u8[196608]{0}', space=vmem, size = 0x30000, scoped, tag = 'input window, operand 5, single buffered']
    #allocation11 [shape = 's32[1]{0}', space=sflag, size = 0x4, scoped, tag = 'scoped memory for tpu_custom_call.1']
    #allocation12 [shape = 'u8[65536]{0}', space=vmem, size = 0x10000, scoped, tag = 'input window, operand 6, single buffered']
    #allocation13 [shape = 'u8[16384]{0}', space=vmem, size = 0x4000, scoped, tag = 'output window, operand 0, single buffered']
    %14 = vsyncpa [#allocation5], 0
    %15 = vsyncpa [#allocation8], 0
    %16 = vsyncpa [#allocation11], 0
    %17 = vsyncpa [#allocation6], 0
    // Predicated region
    $region2: #{tpu_custom_call.1} parent=1 // pred_check
      _
    $region3: #{tpu_custom_call.1} parent=1 // pred_check_branch
      %19 = sbr.rel (0) target = $region5
    $region4: #{tpu_custom_call.1} parent=1 // pred_region
      %21 = vsyncadd [#allocation5], 0
      %s22 = sshll.u32 %s0, 4
      %s23 = int_to_ptr.hbm [resolvable:$true] %s22
      %s24 = sshll.u32 [#allocation4], 4
      %s25 = int_to_ptr.vmem [resolvable:$true] %s24
      %30 = dma.hbm_to_vmem [thread:$0]  %s23, 2048, %s25, [#allocation5], 128, 128, 8
    $region5: #{tpu_custom_call.1} parent=1 // pred_fallthru
      _
    // Predicated region
    $region6: #{tpu_custom_call.1} parent=1 // pred_check
      _
    $region7: #{tpu_custom_call.1} parent=1 // pred_check_branch
      %32 = sbr.rel (0) target = $region9
    $region8: #{tpu_custom_call.1} parent=1 // pred_region
      %34 = vsyncadd [#allocation8], 0
      %s35 = sshll.u32 %s1, 4
      %s36 = int_to_ptr.hbm [resolvable:$true] %s35
      %s37 = sshll.u32 [#allocation7], 4
      %s38 = int_to_ptr.vmem [resolvable:$true] %s37
      %43 = dma.hbm_to_vmem [thread:$0]  %s36, 3072, %s38, [#allocation8], 128, 128, 8
    $region9: #{tpu_custom_call.1} parent=1 // pred_fallthru
      _
    // Predicated region
    $region10: #{tpu_custom_call.1} parent=1 // pred_check
      _
    $region11: #{tpu_custom_call.1} parent=1 // pred_check_branch
      %45 = sbr.rel (0) target = $region13
    $region12: #{tpu_custom_call.1} parent=1 // pred_region
      %47 = vsyncadd [#allocation8], 0
      %s48 = sshll.u32 %s2, 4
      %s49 = int_to_ptr.hbm [resolvable:$true] %s48
      %s50 = sshll.u32 [#allocation9], 4
      %s51 = int_to_ptr.vmem [resolvable:$true] %s50
      %56 = dma.hbm_to_vmem [thread:$0]  %s49, 2048, %s51, [#allocation8], 128, 128, 8
    $region13: #{tpu_custom_call.1} parent=1 // pred_fallthru
      _
    // Predicated region
    $region14: #{tpu_custom_call.1} parent=1 // pred_check
      _
    $region15: #{tpu_custom_call.1} parent=1 // pred_check_branch
      %58 = sbr.rel (0) target = $region17
    $region16: #{tpu_custom_call.1} parent=1 // pred_region
      _
    $region17: #{tpu_custom_call.1} parent=1 // pred_fallthru
      _
    // Predicated region
    $region18: #{tpu_custom_call.1} parent=1 // pred_check
      _
    $region19: #{tpu_custom_call.1} parent=1 // pred_check_branch
      %60 = sbr.rel (0) target = $region21
    $region20: #{tpu_custom_call.1} parent=1 // pred_region
      _
    $region21: #{tpu_custom_call.1} parent=1 // pred_fallthru
      _
    // Predicated region
    $region22: #{tpu_custom_call.1} parent=1 // pred_check
      _
    $region23: #{tpu_custom_call.1} parent=1 // pred_check_branch
      %62 = sbr.rel (0) target = $region25
    $region24: #{tpu_custom_call.1} parent=1 // pred_region
      %64 = vsyncadd [#allocation11], 0
      %s65 = sshll.u32 %s5, 4
      %s66 = int_to_ptr.hbm [resolvable:$true] %s65
      %s67 = sshll.u32 [#allocation10], 4
      %s68 = int_to_ptr.vmem [resolvable:$true] %s67
      %73 = dma.hbm_to_vmem [thread:$0]  %s66, 6144, %s68, [#allocation11], 128, 128, 8
    $region25: #{tpu_custom_call.1} parent=1 // pred_fallthru
      _
    // Predicated region
    $region26: #{tpu_custom_call.1} parent=1 // pred_check
      _
    $region27: #{tpu_custom_call.1} parent=1 // pred_check_branch
      %75 = sbr.rel (0) target = $region29
    $region28: #{tpu_custom_call.1} parent=1 // pred_region
      %77 = vsyncadd [#allocation11], 0
      %s78 = sshll.u32 %s6, 4
      %s79 = int_to_ptr.hbm [resolvable:$true] %s78
      %s80 = sshll.u32 [#allocation12], 4
      %s81 = int_to_ptr.vmem [resolvable:$true] %s80
      %86 = dma.hbm_to_vmem [thread:$0]  %s79, 2048, %s81, [#allocation11], 128, 128, 8
    $region29: #{tpu_custom_call.1} parent=1 // pred_fallthru
      _
    // Predicated region
    $region30: #{tpu_custom_call.1} parent=1 // pred_check
      _
    $region31: #{tpu_custom_call.1} parent=1 // pred_check_branch
      %88 = sbr.rel (0) target = $region33
    $region32: #{tpu_custom_call.1} parent=1 // pred_region
      _
    $region33: #{tpu_custom_call.1} parent=1 // pred_fallthru
      _
    // Predicated region
    $region34: #{tpu_custom_call.1} parent=1 // pred_check
      _
    $region35: #{tpu_custom_call.1} parent=1 // pred_check_branch
      %90 = sbr.rel (0) target = $region37
    $region36: #{tpu_custom_call.1} parent=1 // pred_region
      _
    $region37: #{tpu_custom_call.1} parent=1 // pred_fallthru
      _
    // Predicated region
    $region38: #{tpu_custom_call.1} parent=1 // pred_check
      _
    $region39: #{tpu_custom_call.1} parent=1 // pred_check_branch
      %92 = sbr.rel (0) target = $region41
    $region40: #{tpu_custom_call.1} parent=1 // pred_region
      %94 = dma.done [#allocation5], 2048
    $region41: #{tpu_custom_call.1} parent=1 // pred_fallthru
      _
    // Predicated region
    $region42: #{tpu_custom_call.1} parent=1 // pred_check
      _
    $region43: #{tpu_custom_call.1} parent=1 // pred_check_branch
      %96 = sbr.rel (0) target = $region45
    $region44: #{tpu_custom_call.1} parent=1 // pred_region
      %98 = dma.done [#allocation8], 3072
    $region45: #{tpu_custom_call.1} parent=1 // pred_fallthru
      _
    // Predicated region
    $region46: #{tpu_custom_call.1} parent=1 // pred_check
      _
    $region47: #{tpu_custom_call.1} parent=1 // pred_check_branch
      %100 = sbr.rel (0) target = $region49
    $region48: #{tpu_custom_call.1} parent=1 // pred_region
      %102 = dma.done [#allocation8], 2048
    $region49: #{tpu_custom_call.1} parent=1 // pred_fallthru
      _
    // Predicated region
    $region50: #{tpu_custom_call.1} parent=1 // pred_check
      _
    $region51: #{tpu_custom_call.1} parent=1 // pred_check_branch
      %104 = sbr.rel (0) target = $region53
    $region52: #{tpu_custom_call.1} parent=1 // pred_region
      %106 = dma.done [#allocation11], 6144
    $region53: #{tpu_custom_call.1} parent=1 // pred_fallthru
      _
    // Predicated region
    $region54: #{tpu_custom_call.1} parent=1 // pred_check
      _
    $region55: #{tpu_custom_call.1} parent=1 // pred_check_branch
      %108 = sbr.rel (0) target = $region57
    $region56: #{tpu_custom_call.1} parent=1 // pred_region
      %110 = dma.done [#allocation11], 2048
    $region57: #{tpu_custom_call.1} parent=1 // pred_fallthru
      _
    %vm111 = vcmask 516096
    %112 = vst.msk [vmem:[#allocation2] sm:$0x1] %vm111, 0.0
    %113 = vst.msk [vmem:[#allocation2 + $0x18] sm:$0x1] %vm111, 0.0
    %114 = vst.msk [vmem:[#allocation2 + $0x11] sm:$0x1] %vm111, 0.0
    %115 = vst.msk [vmem:[#allocation2 + $0x29] sm:$0x1] %vm111, 0.0
    %v116 = vld [vmem:[#allocation4] sm:$0xff]
    %v117 = vld [vmem:[#allocation4 + $0x8] sm:$0xff]
    %v118 = vld [vmem:[#allocation4 + $0x40] sm:$0xff]
    %v119 = vld [vmem:[#allocation4 + $0x48] sm:$0xff]
    %vm120 = vcmask 130048
    %121 = vst.msk [vmem:[#allocation2 + $0x1] sm:$0xff] %vm120, %v116
    %122 = vst.msk [vmem:[#allocation2 + $0x9] sm:$0xff] %vm120, %v117
    %123 = vst.msk [vmem:[#allocation2 + $0x19] sm:$0xff] %vm120, %v118
    %124 = vst.msk [vmem:[#allocation2 + $0x21] sm:$0xff] %vm120, %v119
    %s125 = scalar_lea.vmem [#allocation4], 16
    %v126 = vld [vmem:[%s125] sm:$0xff]
    %v127 = vld [vmem:[%s125 + $0x8] sm:$0xff]
    %v128 = vld [vmem:[%s125 + $0x40] sm:$0xff]
    %v129 = vld [vmem:[%s125 + $0x48] sm:$0xff]
    %134 = vrot.lane.b32.xlu0 %v126, 16
    %v135 = vpop.permute.xlu0 %134
    %136 = vrot.lane.b32.xlu0 %v127, 16
    %v137 = vpop.permute.xlu0 %136
    %138 = vrot.lane.b32.xlu0 %v128, 16
    %v139 = vpop.permute.xlu0 %138
    %140 = vrot.lane.b32.xlu0 %v129, 16
    %v141 = vpop.permute.xlu0 %140
    %vm146 = vcmask 261248
    %147 = vst.msk [vmem:[#allocation2 + $0x1] sm:$0xff] %vm146, %v135
    %148 = vst.msk [vmem:[#allocation2 + $0x9] sm:$0xff] %vm146, %v137
    %149 = vst.msk [vmem:[#allocation2 + $0x19] sm:$0xff] %vm146, %v139
    %150 = vst.msk [vmem:[#allocation2 + $0x21] sm:$0xff] %vm146, %v141
    %s151 = scalar_lea.vmem [#allocation4], 32
    %v152 = vld [vmem:[%s151] sm:$0xff]
    %v153 = vld [vmem:[%s151 + $0x8] sm:$0xff]
    %v154 = vld [vmem:[%s151 + $0x40] sm:$0xff]
    %v155 = vld [vmem:[%s151 + $0x48] sm:$0xff]
    %160 = vrot.lane.b32.xlu0 %v152, 32
    %v161 = vpop.permute.xlu0 %160
    %162 = vrot.lane.b32.xlu0 %v153, 32
    %v163 = vpop.permute.xlu0 %162
    %164 = vrot.lane.b32.xlu0 %v154, 32
    %v165 = vpop.permute.xlu0 %164
    %166 = vrot.lane.b32.xlu0 %v155, 32
    %v167 = vpop.permute.xlu0 %166
    %vm172 = vcmask 392448
    %173 = vst.msk [vmem:[#allocation2 + $0x1] sm:$0xff] %vm172, %v161
    %174 = vst.msk [vmem:[#allocation2 + $0x9] sm:$0xff] %vm172, %v163
    %175 = vst.msk [vmem:[#allocation2 + $0x19] sm:$0xff] %vm172, %v165
    %176 = vst.msk [vmem:[#allocation2 + $0x21] sm:$0xff] %vm172, %v167
    %s177 = scalar_lea.vmem [#allocation4], 48
    %v178 = vld [vmem:[%s177] sm:$0xff]
    %v179 = vld [vmem:[%s177 + $0x8] sm:$0xff]
    %v180 = vld [vmem:[%s177 + $0x40] sm:$0xff]
    %v181 = vld [vmem:[%s177 + $0x48] sm:$0xff]
    %186 = vrot.lane.b32.xlu0 %v178, 48
    %v187 = vpop.permute.xlu0 %186
    %188 = vrot.lane.b32.xlu0 %v179, 48
    %v189 = vpop.permute.xlu0 %188
    %190 = vrot.lane.b32.xlu0 %v180, 48
    %v191 = vpop.permute.xlu0 %190
    %192 = vrot.lane.b32.xlu0 %v181, 48
    %v193 = vpop.permute.xlu0 %192
    %vm198 = vcmask 523648
    %199 = vst.msk [vmem:[#allocation2 + $0x1] sm:$0xff] %vm198, %v187
    %200 = vst.msk [vmem:[#allocation2 + $0x9] sm:$0xff] %vm198, %v189
    %201 = vst.msk [vmem:[#allocation2 + $0x19] sm:$0xff] %vm198, %v191
    %202 = vst.msk [vmem:[#allocation2 + $0x21] sm:$0xff] %vm198, %v193
    %v203 = vld [vmem:[#allocation2] sm:$0xff]
    %v204 = vld [vmem:[#allocation2 + $0x8] sm:$0xff]
    %v205 = vld [vmem:[#allocation2 + $0x18] sm:$0xff]
    %v206 = vld [vmem:[#allocation2 + $0x20] sm:$0xff]
    %v207 = vld [vmem:[#allocation7] sm:$0xff]
    %v208 = vld [vmem:[#allocation7 + $0x8] sm:$0xff]
    %v209 = vld [vmem:[#allocation7 + $0x10] sm:$0xff]
    %v210 = vld [vmem:[#allocation7 + $0x18] sm:$0xff]
    %v211 = vld [vmem:[#allocation7 + $0x20] sm:$0xff]
    %v212 = vld [vmem:[#allocation7 + $0x28] sm:$0xff]
    %v213 = vld [vmem:[#allocation7 + $0x30] sm:$0xff]
    %v214 = vld [vmem:[#allocation7 + $0x38] sm:$0xff]
    %v215 = vld [vmem:[#allocation2 + $0x1] sm:$0xff]
    %v216 = vld [vmem:[#allocation2 + $0x9] sm:$0xff]
    %v217 = vld [vmem:[#allocation2 + $0x19] sm:$0xff]
    %v218 = vld [vmem:[#allocation2 + $0x21] sm:$0xff]
    %s219 = scalar_lea.vmem [#allocation7], 64
    %v220 = vld [vmem:[%s219] sm:$0xff]
    %v221 = vld [vmem:[%s219 + $0x8] sm:$0xff]
    %v222 = vld [vmem:[%s219 + $0x10] sm:$0xff]
    %v223 = vld [vmem:[%s219 + $0x18] sm:$0xff]
    %v224 = vld [vmem:[%s219 + $0x20] sm:$0xff]
    %v225 = vld [vmem:[%s219 + $0x28] sm:$0xff]
    %v226 = vld [vmem:[%s219 + $0x30] sm:$0xff]
    %v227 = vld [vmem:[%s219 + $0x38] sm:$0xff]
    %vm228 = vcmask 523264
    %v230 = vsel %vm228, %v215, 0
    %v233 = vsel %vm228, %v216, 0
    %v236 = vsel %vm228, %v217, 0
    %v239 = vsel %vm228, %v218, 0
    %241 = vmatpush.msra.mxu0 0.0
    %242 = vmatpush.msra.mxu0 0.0
    %243 = vmatpush.msra.mxu0 0.0
    %244 = vmatpush.msra.mxu0 0.0
    %245 = vmatpush.msra.mxu0 0.0
    %246 = vmatpush.msra.mxu0 0.0
    %247 = vmatpush.msra.mxu0 0.0
    %248 = vmatpush.msra.mxu0 0.0
    %249 = vmatpush.msra.mxu0 %v227
    %250 = vmatpush.msra.mxu0 %v226
    %251 = vmatpush.msra.mxu0 %v225
    %252 = vmatpush.msra.mxu0 %v224
    %253 = vmatpush.msra.mxu0 %v223
    %254 = vmatpush.msra.mxu0 %v222
    %255 = vmatpush.msra.mxu0 %v221
    %256 = vmatpush.msra.mxu0 %v220
    %257 = vmatmul.f32.gmra.mxu0 %v230
    %v258 = vpop.f32.mrf.mxu0
    %v259 = vadd.f32 0.0, %v258
    %260 = vmatmul.f32.gmra.mxu0 %v233
    %v261 = vpop.f32.mrf.mxu0
    %v262 = vadd.f32 0.0, %v261
    %263 = vmatmul.f32.gmra.mxu0 %v236
    %v264 = vpop.f32.mrf.mxu0
    %v265 = vadd.f32 0.0, %v264
    %266 = vmatmul.f32.gmra.mxu0 %v239
    %v267 = vpop.f32.mrf.mxu0
    %v268 = vadd.f32 0.0, %v267
    %269 = vdwg.mxu0
    %v271 = vsel %vm228, %v203, 0
    %v274 = vsel %vm228, %v204, 0
    %v277 = vsel %vm228, %v205, 0
    %v280 = vsel %vm228, %v206, 0
    %282 = vmatpush.msra.mxu0 0.0
    %283 = vmatpush.msra.mxu0 0.0
    %284 = vmatpush.msra.mxu0 0.0
    %285 = vmatpush.msra.mxu0 0.0
    %286 = vmatpush.msra.mxu0 0.0
    %287 = vmatpush.msra.mxu0 0.0
    %288 = vmatpush.msra.mxu0 0.0
    %289 = vmatpush.msra.mxu0 0.0
    %290 = vmatpush.msra.mxu0 %v214
    %291 = vmatpush.msra.mxu0 %v213
    %292 = vmatpush.msra.mxu0 %v212
    %293 = vmatpush.msra.mxu0 %v211
    %294 = vmatpush.msra.mxu0 %v210
    %295 = vmatpush.msra.mxu0 %v209
    %296 = vmatpush.msra.mxu0 %v208
    %297 = vmatpush.msra.mxu0 %v207
    %298 = vmatmul.f32.gmra.mxu0 %v271
    %v299 = vpop.f32.mrf.mxu0
    %v300 = vadd.f32 %v259, %v299
    %301 = vmatmul.f32.gmra.mxu0 %v274
    %v302 = vpop.f32.mrf.mxu0
    %v303 = vadd.f32 %v262, %v302
    %304 = vmatmul.f32.gmra.mxu0 %v277
    %v305 = vpop.f32.mrf.mxu0
    %v306 = vadd.f32 %v265, %v305
    %307 = vmatmul.f32.gmra.mxu0 %v280
    %v308 = vpop.f32.mrf.mxu0
    %v309 = vadd.f32 %v268, %v308
    %310 = vdwg.mxu0
    %v311 = vld [vmem:[#allocation2 + $0x2] sm:$0xff]
    %v312 = vld [vmem:[#allocation2 + $0xa] sm:$0xff]
    %v313 = vld [vmem:[#allocation2 + $0x1a] sm:$0xff]
    %v314 = vld [vmem:[#allocation2 + $0x22] sm:$0xff]
    %s315 = scalar_lea.vmem [#allocation7], 128
    %v316 = vld [vmem:[%s315] sm:$0xff]
    %v317 = vld [vmem:[%s315 + $0x8] sm:$0xff]
    %v318 = vld [vmem:[%s315 + $0x10] sm:$0xff]
    %v319 = vld [vmem:[%s315 + $0x18] sm:$0xff]
    %v320 = vld [vmem:[%s315 + $0x20] sm:$0xff]
    %v321 = vld [vmem:[%s315 + $0x28] sm:$0xff]
    %v322 = vld [vmem:[%s315 + $0x30] sm:$0xff]
    %v323 = vld [vmem:[%s315 + $0x38] sm:$0xff]
    %v325 = vsel %vm228, %v311, 0
    %v328 = vsel %vm228, %v312, 0
    %v331 = vsel %vm228, %v313, 0
    %v334 = vsel %vm228, %v314, 0
    %336 = vmatpush.msra.mxu0 0.0
    %337 = vmatpush.msra.mxu0 0.0
    %338 = vmatpush.msra.mxu0 0.0
    %339 = vmatpush.msra.mxu0 0.0
    %340 = vmatpush.msra.mxu0 0.0
    %341 = vmatpush.msra.mxu0 0.0
    %342 = vmatpush.msra.mxu0 0.0
    %343 = vmatpush.msra.mxu0 0.0
    %344 = vmatpush.msra.mxu0 %v323
    %345 = vmatpush.msra.mxu0 %v322
    %346 = vmatpush.msra.mxu0 %v321
    %347 = vmatpush.msra.mxu0 %v320
    %348 = vmatpush.msra.mxu0 %v319
    %349 = vmatpush.msra.mxu0 %v318
    %350 = vmatpush.msra.mxu0 %v317
    %351 = vmatpush.msra.mxu0 %v316
    %352 = vmatmul.f32.gmra.mxu0 %v325
    %v353 = vpop.f32.mrf.mxu0
    %v354 = vadd.f32 0.0, %v353
    %355 = vmatmul.f32.gmra.mxu0 %v328
    %v356 = vpop.f32.mrf.mxu0
    %v357 = vadd.f32 0.0, %v356
    %358 = vmatmul.f32.gmra.mxu0 %v331
    %v359 = vpop.f32.mrf.mxu0
    %v360 = vadd.f32 0.0, %v359
    %361 = vmatmul.f32.gmra.mxu0 %v334
    %v362 = vpop.f32.mrf.mxu0
    %v363 = vadd.f32 0.0, %v362
    %364 = vdwg.mxu0
    %v365 = vadd.f32 %v300, %v354
    %v366 = vadd.f32 %v303, %v357
    %v367 = vadd.f32 %v306, %v360
    %v368 = vadd.f32 %v309, %v363
    %v369 = vadd.f32 %v365, %v366
    %v370 = vadd.f32 %v369, %v367
    %v371 = vadd.f32 %v370, %v368
    %v372 = vrot.slane %v371, 4
    %v373 = vadd.f32 %v371, %v372
    %v374 = vrot.slane %v373, 2
    %v375 = vadd.f32 %v373, %v374
    %v376 = vrot.slane %v375, 1
    %v377 = vadd.f32 %v375, %v376
    %v378 = vld [vmem:[#allocation9] sm:$0xff]
    %v379 = vld [vmem:[#allocation9 + $0x8] sm:$0xff]
    %v380 = vld [vmem:[#allocation9 + $0x10] sm:$0xff]
    %v381 = vld [vmem:[#allocation9 + $0x18] sm:$0xff]
    %v382 = vld [vmem:[#allocation9 + $0x20] sm:$0xff]
    %v383 = vld [vmem:[#allocation9 + $0x28] sm:$0xff]
    %v384 = vld [vmem:[#allocation9 + $0x30] sm:$0xff]
    %v385 = vld [vmem:[#allocation9 + $0x38] sm:$0xff]
    %v386 = vld [vmem:[#allocation9 + $0x40] sm:$0xff]
    %v387 = vld [vmem:[#allocation9 + $0x48] sm:$0xff]
    %v388 = vld [vmem:[#allocation9 + $0x50] sm:$0xff]
    %v389 = vld [vmem:[#allocation9 + $0x58] sm:$0xff]
    %v390 = vld [vmem:[#allocation9 + $0x60] sm:$0xff]
    %v391 = vld [vmem:[#allocation9 + $0x68] sm:$0xff]
    %v392 = vld [vmem:[#allocation9 + $0x70] sm:$0xff]
    %v393 = vld [vmem:[#allocation9 + $0x78] sm:$0xff]
    %394 = vmatpush.msra.mxu0 %v393
    %395 = vmatpush.msra.mxu0 %v392
    %396 = vmatpush.msra.mxu0 %v391
    %397 = vmatpush.msra.mxu0 %v390
    %398 = vmatpush.msra.mxu0 %v389
    %399 = vmatpush.msra.mxu0 %v388
    %400 = vmatpush.msra.mxu0 %v387
    %401 = vmatpush.msra.mxu0 %v386
    %402 = vmatpush.msra.mxu0 %v385
    %403 = vmatpush.msra.mxu0 %v384
    %404 = vmatpush.msra.mxu0 %v383
    %405 = vmatpush.msra.mxu0 %v382
    %406 = vmatpush.msra.mxu0 %v381
    %407 = vmatpush.msra.mxu0 %v380
    %408 = vmatpush.msra.mxu0 %v379
    %409 = vmatpush.msra.mxu0 %v378
    %410 = vmatmul.f32.gmra.mxu0 %v377
    %v411 = vpop.f32.mrf.mxu0
    %v412 = vadd.f32 0.0, %v411
    %413 = vdwg.mxu0
    %v414 = vperm.slane %v412, 0
    %v415 = vsub.f32 %v365, %v414
    %v416 = vsub.f32 %v366, %v414
    %v417 = vsub.f32 %v367, %v414
    %v418 = vsub.f32 %v368, %v414
    %v419 = vmul.f32 %v415, %v415
    %v420 = vmul.f32 %v416, %v416
    %v421 = vmul.f32 %v417, %v417
    %v422 = vmul.f32 %v418, %v418
    %v423 = vadd.f32 %v419, %v420
    %v424 = vadd.f32 %v423, %v421
    %v425 = vadd.f32 %v424, %v422
    %v426 = vrot.slane %v425, 4
    %v427 = vadd.f32 %v425, %v426
    %v428 = vrot.slane %v427, 2
    %v429 = vadd.f32 %v427, %v428
    %v430 = vrot.slane %v429, 1
    %v431 = vadd.f32 %v429, %v430
    %v432 = vld [vmem:[%s3] sm:$0x1]
    %433 = vmatpush.msra.mxu0 %v393
    %434 = vmatpush.msra.mxu0 %v392
    %435 = vmatpush.msra.mxu0 %v391
    %436 = vmatpush.msra.mxu0 %v390
    %437 = vmatpush.msra.mxu0 %v389
    %438 = vmatpush.msra.mxu0 %v388
    %439 = vmatpush.msra.mxu0 %v387
    %440 = vmatpush.msra.mxu0 %v386
    %441 = vmatpush.msra.mxu0 %v385
    %442 = vmatpush.msra.mxu0 %v384
    %443 = vmatpush.msra.mxu0 %v383
    %444 = vmatpush.msra.mxu0 %v382
    %445 = vmatpush.msra.mxu0 %v381
    %446 = vmatpush.msra.mxu0 %v380
    %447 = vmatpush.msra.mxu0 %v379
    %448 = vmatpush.msra.mxu0 %v378
    %449 = vmatmul.f32.gmra.mxu0 %v431
    %v450 = vpop.f32.mrf.mxu0
    %v451 = vadd.f32 1e-05, %v450
    %452 = vdwg.mxu0
    %v453 = vrsqrt.pop %v451
    %v454 = vmul.f32 %v453, %v451
    %v455 = vmul.f32 %v454, %v453
    %v456 = vmul.f32 0.5, %v455
    %v457 = vsub.f32 1.5, %v456
    %v458 = vmul.f32 %v453, %v457
    %vm459 = vweird.f32 %v451
    %vm460 = vweird.f32 %v453
    %vm461 = vmor %vm459, %vm460
    %v462 = vsel %vm461, %v453, %v458
    %v463 = vmul.f32 %v432, %v462
    %v465 = vperm.slane %v463, 0
    %v467 = vmul.f32 %v415, %v465
    %v468 = vmul.f32 %v416, %v465
    %v469 = vmul.f32 %v417, %v465
    %v470 = vmul.f32 %v418, %v465
    %v471 = vld [vmem:[%s4] sm:$0x1]
    %v473 = vperm.slane %v471, 0
    %v475 = vadd.f32 %v467, %v473
    %v476 = vadd.f32 %v468, %v473
    %v477 = vadd.f32 %v469, %v473
    %v478 = vadd.f32 %v470, %v473
    %v479 = vmax.f32 %v475, 0.0
    %v480 = vmax.f32 %v476, 0.0
    %v481 = vmax.f32 %v477, 0.0
    %v482 = vmax.f32 %v478, 0.0
    %483 = vst [vmem:[#allocation3] sm:$0x1] 0.0
    %484 = vst [vmem:[#allocation3 + $0x18] sm:$0x1] 0.0
    %485 = vst [vmem:[#allocation3 + $0x11] sm:$0x1] 0.0
    %486 = vst [vmem:[#allocation3 + $0x29] sm:$0x1] 0.0
    %487 = vst [vmem:[#allocation3 + $0x1] sm:$0xff] %v479
    %488 = vst [vmem:[#allocation3 + $0x9] sm:$0xff] %v480
    %489 = vst [vmem:[#allocation3 + $0x19] sm:$0xff] %v481
    %490 = vst [vmem:[#allocation3 + $0x21] sm:$0xff] %v482
    %v491 = vld [vmem:[#allocation3] sm:$0xff]
    %v492 = vld [vmem:[#allocation3 + $0x8] sm:$0xff]
    %v493 = vld [vmem:[#allocation3 + $0x18] sm:$0xff]
    %v494 = vld [vmem:[#allocation3 + $0x20] sm:$0xff]
    %v495 = vld [vmem:[#allocation10] sm:$0xff]
    %v496 = vld [vmem:[#allocation10 + $0x8] sm:$0xff]
    %v497 = vld [vmem:[#allocation10 + $0x10] sm:$0xff]
    %v498 = vld [vmem:[#allocation10 + $0x18] sm:$0xff]
    %v499 = vld [vmem:[#allocation10 + $0x20] sm:$0xff]
    %v500 = vld [vmem:[#allocation10 + $0x28] sm:$0xff]
    %v501 = vld [vmem:[#allocation10 + $0x30] sm:$0xff]
    %v502 = vld [vmem:[#allocation10 + $0x38] sm:$0xff]
    %v503 = vld [vmem:[#allocation10 + $0x40] sm:$0xff]
    %v504 = vld [vmem:[#allocation10 + $0x48] sm:$0xff]
    %v505 = vld [vmem:[#allocation10 + $0x50] sm:$0xff]
    %v506 = vld [vmem:[#allocation10 + $0x58] sm:$0xff]
    %v507 = vld [vmem:[#allocation10 + $0x60] sm:$0xff]
    %v508 = vld [vmem:[#allocation10 + $0x68] sm:$0xff]
    %v509 = vld [vmem:[#allocation10 + $0x70] sm:$0xff]
    %v510 = vld [vmem:[#allocation10 + $0x78] sm:$0xff]
    %v511 = vld [vmem:[#allocation3 + $0x1] sm:$0xff]
    %v512 = vld [vmem:[#allocation3 + $0x9] sm:$0xff]
    %v513 = vld [vmem:[#allocation3 + $0x19] sm:$0xff]
    %v514 = vld [vmem:[#allocation3 + $0x21] sm:$0xff]
    %s515 = scalar_lea.vmem [#allocation10], 128
    %v516 = vld [vmem:[%s515] sm:$0xff]
    %v517 = vld [vmem:[%s515 + $0x8] sm:$0xff]
    %v518 = vld [vmem:[%s515 + $0x10] sm:$0xff]
    %v519 = vld [vmem:[%s515 + $0x18] sm:$0xff]
    %v520 = vld [vmem:[%s515 + $0x20] sm:$0xff]
    %v521 = vld [vmem:[%s515 + $0x28] sm:$0xff]
    %v522 = vld [vmem:[%s515 + $0x30] sm:$0xff]
    %v523 = vld [vmem:[%s515 + $0x38] sm:$0xff]
    %v524 = vld [vmem:[%s515 + $0x40] sm:$0xff]
    %v525 = vld [vmem:[%s515 + $0x48] sm:$0xff]
    %v526 = vld [vmem:[%s515 + $0x50] sm:$0xff]
    %v527 = vld [vmem:[%s515 + $0x58] sm:$0xff]
    %v528 = vld [vmem:[%s515 + $0x60] sm:$0xff]
    %v529 = vld [vmem:[%s515 + $0x68] sm:$0xff]
    %v530 = vld [vmem:[%s515 + $0x70] sm:$0xff]
    %v531 = vld [vmem:[%s515 + $0x78] sm:$0xff]
    %532 = vmatpush.msra.mxu0 %v531
    %533 = vmatpush.msra.mxu0 %v530
    %534 = vmatpush.msra.mxu0 %v529
    %535 = vmatpush.msra.mxu0 %v528
    %536 = vmatpush.msra.mxu0 %v527
    %537 = vmatpush.msra.mxu0 %v526
    %538 = vmatpush.msra.mxu0 %v525
    %539 = vmatpush.msra.mxu0 %v524
    %540 = vmatpush.msra.mxu0 %v523
    %541 = vmatpush.msra.mxu0 %v522
    %542 = vmatpush.msra.mxu0 %v521
    %543 = vmatpush.msra.mxu0 %v520
    %544 = vmatpush.msra.mxu0 %v519
    %545 = vmatpush.msra.mxu0 %v518
    %546 = vmatpush.msra.mxu0 %v517
    %547 = vmatpush.msra.mxu0 %v516
    %548 = vmatmul.f32.gmra.mxu0 %v511
    %v549 = vpop.f32.mrf.mxu0
    %v550 = vadd.f32 0.0, %v549
    %551 = vmatmul.f32.gmra.mxu0 %v512
    %v552 = vpop.f32.mrf.mxu0
    %v553 = vadd.f32 0.0, %v552
    %554 = vmatmul.f32.gmra.mxu0 %v513
    %v555 = vpop.f32.mrf.mxu0
    %v556 = vadd.f32 0.0, %v555
    %557 = vmatmul.f32.gmra.mxu0 %v514
    %v558 = vpop.f32.mrf.mxu0
    %v559 = vadd.f32 0.0, %v558
    %560 = vdwg.mxu0
    %561 = vmatpush.msra.mxu0 %v510
    %562 = vmatpush.msra.mxu0 %v509
    %563 = vmatpush.msra.mxu0 %v508
    %564 = vmatpush.msra.mxu0 %v507
    %565 = vmatpush.msra.mxu0 %v506
    %566 = vmatpush.msra.mxu0 %v505
    %567 = vmatpush.msra.mxu0 %v504
    %568 = vmatpush.msra.mxu0 %v503
    %569 = vmatpush.msra.mxu0 %v502
    %570 = vmatpush.msra.mxu0 %v501
    %571 = vmatpush.msra.mxu0 %v500
    %572 = vmatpush.msra.mxu0 %v499
    %573 = vmatpush.msra.mxu0 %v498
    %574 = vmatpush.msra.mxu0 %v497
    %575 = vmatpush.msra.mxu0 %v496
    %576 = vmatpush.msra.mxu0 %v495
    %577 = vmatmul.f32.gmra.mxu0 %v491
    %v578 = vpop.f32.mrf.mxu0
    %v579 = vadd.f32 %v550, %v578
    %580 = vmatmul.f32.gmra.mxu0 %v492
    %v581 = vpop.f32.mrf.mxu0
    %v582 = vadd.f32 %v553, %v581
    %583 = vmatmul.f32.gmra.mxu0 %v493
    %v584 = vpop.f32.mrf.mxu0
    %v585 = vadd.f32 %v556, %v584
    %586 = vmatmul.f32.gmra.mxu0 %v494
    %v587 = vpop.f32.mrf.mxu0
    %v588 = vadd.f32 %v559, %v587
    %589 = vdwg.mxu0
    %v590 = vld [vmem:[#allocation3 + $0x2] sm:$0xff]
    %v591 = vld [vmem:[#allocation3 + $0xa] sm:$0xff]
    %v592 = vld [vmem:[#allocation3 + $0x1a] sm:$0xff]
    %v593 = vld [vmem:[#allocation3 + $0x22] sm:$0xff]
    %s594 = scalar_lea.vmem [#allocation10], 256
    %v595 = vld [vmem:[%s594] sm:$0xff]
    %v596 = vld [vmem:[%s594 + $0x8] sm:$0xff]
    %v597 = vld [vmem:[%s594 + $0x10] sm:$0xff]
    %v598 = vld [vmem:[%s594 + $0x18] sm:$0xff]
    %v599 = vld [vmem:[%s594 + $0x20] sm:$0xff]
    %v600 = vld [vmem:[%s594 + $0x28] sm:$0xff]
    %v601 = vld [vmem:[%s594 + $0x30] sm:$0xff]
    %v602 = vld [vmem:[%s594 + $0x38] sm:$0xff]
    %v603 = vld [vmem:[%s594 + $0x40] sm:$0xff]
    %v604 = vld [vmem:[%s594 + $0x48] sm:$0xff]
    %v605 = vld [vmem:[%s594 + $0x50] sm:$0xff]
    %v606 = vld [vmem:[%s594 + $0x58] sm:$0xff]
    %v607 = vld [vmem:[%s594 + $0x60] sm:$0xff]
    %v608 = vld [vmem:[%s594 + $0x68] sm:$0xff]
    %v609 = vld [vmem:[%s594 + $0x70] sm:$0xff]
    %v610 = vld [vmem:[%s594 + $0x78] sm:$0xff]
    %611 = vmatpush.msra.mxu0 %v610
    %612 = vmatpush.msra.mxu0 %v609
    %613 = vmatpush.msra.mxu0 %v608
    %614 = vmatpush.msra.mxu0 %v607
    %615 = vmatpush.msra.mxu0 %v606
    %616 = vmatpush.msra.mxu0 %v605
    %617 = vmatpush.msra.mxu0 %v604
    %618 = vmatpush.msra.mxu0 %v603
    %619 = vmatpush.msra.mxu0 %v602
    %620 = vmatpush.msra.mxu0 %v601
    %621 = vmatpush.msra.mxu0 %v600
    %622 = vmatpush.msra.mxu0 %v599
    %623 = vmatpush.msra.mxu0 %v598
    %624 = vmatpush.msra.mxu0 %v597
    %625 = vmatpush.msra.mxu0 %v596
    %626 = vmatpush.msra.mxu0 %v595
    %627 = vmatmul.f32.gmra.mxu0 %v590
    %v628 = vpop.f32.mrf.mxu0
    %v629 = vadd.f32 0.0, %v628
    %630 = vmatmul.f32.gmra.mxu0 %v591
    %v631 = vpop.f32.mrf.mxu0
    %v632 = vadd.f32 0.0, %v631
    %633 = vmatmul.f32.gmra.mxu0 %v592
    %v634 = vpop.f32.mrf.mxu0
    %v635 = vadd.f32 0.0, %v634
    %636 = vmatmul.f32.gmra.mxu0 %v593
    %v637 = vpop.f32.mrf.mxu0
    %v638 = vadd.f32 0.0, %v637
    %639 = vdwg.mxu0
    %v640 = vadd.f32 %v579, %v629
    %v641 = vadd.f32 %v582, %v632
    %v642 = vadd.f32 %v585, %v635
    %v643 = vadd.f32 %v588, %v638
    %v644 = vadd.f32 %v640, %v641
    %v645 = vadd.f32 %v644, %v642
    %v646 = vadd.f32 %v645, %v643
    %v647 = vrot.slane %v646, 4
    %v648 = vadd.f32 %v646, %v647
    %v649 = vrot.slane %v648, 2
    %v650 = vadd.f32 %v648, %v649
    %v651 = vrot.slane %v650, 1
    %v652 = vadd.f32 %v650, %v651
    %v653 = vld [vmem:[#allocation12] sm:$0xff]
    %v654 = vld [vmem:[#allocation12 + $0x8] sm:$0xff]
    %v655 = vld [vmem:[#allocation12 + $0x10] sm:$0xff]
    %v656 = vld [vmem:[#allocation12 + $0x18] sm:$0xff]
    %v657 = vld [vmem:[#allocation12 + $0x20] sm:$0xff]
    %v658 = vld [vmem:[#allocation12 + $0x28] sm:$0xff]
    %v659 = vld [vmem:[#allocation12 + $0x30] sm:$0xff]
    %v660 = vld [vmem:[#allocation12 + $0x38] sm:$0xff]
    %v661 = vld [vmem:[#allocation12 + $0x40] sm:$0xff]
    %v662 = vld [vmem:[#allocation12 + $0x48] sm:$0xff]
    %v663 = vld [vmem:[#allocation12 + $0x50] sm:$0xff]
    %v664 = vld [vmem:[#allocation12 + $0x58] sm:$0xff]
    %v665 = vld [vmem:[#allocation12 + $0x60] sm:$0xff]
    %v666 = vld [vmem:[#allocation12 + $0x68] sm:$0xff]
    %v667 = vld [vmem:[#allocation12 + $0x70] sm:$0xff]
    %v668 = vld [vmem:[#allocation12 + $0x78] sm:$0xff]
    %669 = vmatpush.msra.mxu0 %v668
    %670 = vmatpush.msra.mxu0 %v667
    %671 = vmatpush.msra.mxu0 %v666
    %672 = vmatpush.msra.mxu0 %v665
    %673 = vmatpush.msra.mxu0 %v664
    %674 = vmatpush.msra.mxu0 %v663
    %675 = vmatpush.msra.mxu0 %v662
    %676 = vmatpush.msra.mxu0 %v661
    %677 = vmatpush.msra.mxu0 %v660
    %678 = vmatpush.msra.mxu0 %v659
    %679 = vmatpush.msra.mxu0 %v658
    %680 = vmatpush.msra.mxu0 %v657
    %681 = vmatpush.msra.mxu0 %v656
    %682 = vmatpush.msra.mxu0 %v655
    %683 = vmatpush.msra.mxu0 %v654
    %684 = vmatpush.msra.mxu0 %v653
    %685 = vmatmul.f32.gmra.mxu0 %v652
    %v686 = vpop.f32.mrf.mxu0
    %v687 = vadd.f32 0.0, %v686
    %688 = vdwg.mxu0
    %v689 = vperm.slane %v687, 0
    %v690 = vsub.f32 %v640, %v689
    %v691 = vsub.f32 %v641, %v689
    %v692 = vsub.f32 %v642, %v689
    %v693 = vsub.f32 %v643, %v689
    %v694 = vmul.f32 %v690, %v690
    %v695 = vmul.f32 %v691, %v691
    %v696 = vmul.f32 %v692, %v692
    %v697 = vmul.f32 %v693, %v693
    %v698 = vadd.f32 %v694, %v695
    %v699 = vadd.f32 %v698, %v696
    %v700 = vadd.f32 %v699, %v697
    %v701 = vrot.slane %v700, 4
    %v702 = vadd.f32 %v700, %v701
    %v703 = vrot.slane %v702, 2
    %v704 = vadd.f32 %v702, %v703
    %v705 = vrot.slane %v704, 1
    %v706 = vadd.f32 %v704, %v705
    %v707 = vld [vmem:[%s7] sm:$0x1]
    %708 = vmatpush.msra.mxu0 %v668
    %709 = vmatpush.msra.mxu0 %v667
    %710 = vmatpush.msra.mxu0 %v666
    %711 = vmatpush.msra.mxu0 %v665
    %712 = vmatpush.msra.mxu0 %v664
    %713 = vmatpush.msra.mxu0 %v663
    %714 = vmatpush.msra.mxu0 %v662
    %715 = vmatpush.msra.mxu0 %v661
    %716 = vmatpush.msra.mxu0 %v660
    %717 = vmatpush.msra.mxu0 %v659
    %718 = vmatpush.msra.mxu0 %v658
    %719 = vmatpush.msra.mxu0 %v657
    %720 = vmatpush.msra.mxu0 %v656
    %721 = vmatpush.msra.mxu0 %v655
    %722 = vmatpush.msra.mxu0 %v654
    %723 = vmatpush.msra.mxu0 %v653
    %724 = vmatmul.f32.gmra.mxu0 %v706
    %v725 = vpop.f32.mrf.mxu0
    %v726 = vadd.f32 1e-05, %v725
    %727 = vdwg.mxu0
    %v728 = vrsqrt.pop %v726
    %v729 = vmul.f32 %v728, %v726
    %v730 = vmul.f32 %v729, %v728
    %v731 = vmul.f32 0.5, %v730
    %v732 = vsub.f32 1.5, %v731
    %v733 = vmul.f32 %v728, %v732
    %vm734 = vweird.f32 %v726
    %vm735 = vweird.f32 %v728
    %vm736 = vmor %vm734, %vm735
    %v737 = vsel %vm736, %v728, %v733
    %v738 = vmul.f32 %v707, %v737
    %v740 = vperm.slane %v738, 0
    %v742 = vmul.f32 %v690, %v740
    %v743 = vmul.f32 %v691, %v740
    %v744 = vmul.f32 %v692, %v740
    %v745 = vmul.f32 %v693, %v740
    %v746 = vld [vmem:[%s8] sm:$0x1]
    %v748 = vperm.slane %v746, 0
    %v750 = vadd.f32 %v742, %v748
    %v751 = vadd.f32 %v743, %v748
    %v752 = vadd.f32 %v744, %v748
    %v753 = vadd.f32 %v745, %v748
    %v754 = vmax.f32 %v750, 0.0
    %v755 = vmax.f32 %v751, 0.0
    %v756 = vmax.f32 %v752, 0.0
    %v757 = vmax.f32 %v753, 0.0
    %758 = vst [vmem:[#allocation13] sm:$0xff] %v754
    %759 = vst [vmem:[#allocation13 + $0x8] sm:$0xff] %v755
    %760 = vst [vmem:[#allocation13 + $0x10] sm:$0xff] %v756
    %761 = vst [vmem:[#allocation13 + $0x18] sm:$0xff] %v757
    // Predicated region
    $region58: #{tpu_custom_call.1} parent=1 // pred_check
      _
    $region59: #{tpu_custom_call.1} parent=1 // pred_check_branch
      %763 = sbr.rel (0) target = $region61
    $region60: #{tpu_custom_call.1} parent=1 // pred_region
      %765 = vsyncadd [#allocation6], 0
      %s766 = sshll.u32 [#allocation13], 4
      %s767 = int_to_ptr.vmem [resolvable:$true] %s766
      %s768 = sshll.u32 %s9, 4
      %s769 = int_to_ptr.hbm [resolvable:$true] %s768
      %774 = dma.vmem_to_hbm [thread:$0]  %s767, 512, %s769, [#allocation6], 128, 128, 8
    $region61: #{tpu_custom_call.1} parent=1 // pred_fallthru
      _
    // Predicated region
    $region62: #{tpu_custom_call.1} parent=1 // pred_check
      _
    $region63: #{tpu_custom_call.1} parent=1 // pred_check_branch
      %776 = sbr.rel (0) target = $region65
    $region64: #{tpu_custom_call.1} parent=1 // pred_region
      %778 = dma.done [#allocation6], 512
    $region65: #{tpu_custom_call.1} parent=1 // pred_fallthru
      _
    %779 = vsyncpa [#allocation5], 1
    %780 = vsyncpa [#allocation8], 1
    %781 = vsyncpa [#allocation11], 1
    %782 = vsyncpa [#allocation6], 1

</llo_original>
